<compile_context>
chip_gen: v7x
topology: tpu7x:2x2x1
jax: 0.10.0
libtpu: 0.0.40
codegen_flags: <defaults>
</compile_context>

<pallas_src>
import numpy as np
import jax
import jax.numpy as jnp
from jax.experimental import pallas as pl
from jax.experimental.pallas import tpu as pltpu

PHI = (1.0 + np.sqrt(5.0)) / 2.0
EPS = 1e-8

# Below this size the pallas_call fixed cost (+ ~0.35us/grid step) dominates;
# XLA fuses the elementwise chain for free, so dispatch to plain JAX.
_MIN_ELEMS_FOR_PALLAS = 1 << 15


def _round_up(v, m):
    return ((v + m - 1) // m) * m


# ----------------------------- Pallas kernels ------------------------------


def _norm_reduce_kernel(x_ref, w2_ref, nsq_ref):
    """Accumulate sum(x^2 * |w|^2) over batch-row tiles into (1,1) scratch."""
    @pl.when(pl.program_id(0) == 0)
    def _():
        nsq_ref[...] = jnp.zeros_like(nsq_ref)

    x = x_ref[...]                                   # (row_tile, Dp)
    nsq_ref[...] += jnp.sum(x * x * w2_ref[...])     # w2: (1, Dp) broadcast


def _scale_kernel(nsq_ref, x_ref, w_ref, or_ref, oi_ref):
    """out = (x * w) * 1/(PHI*sqrt(norm_sq)+eps), planar real/imag planes."""
    d = PHI * jnp.sqrt(nsq_ref[...]) + EPS           # (1, 1)
    inv = pl.reciprocal(d, approx=True)              # EUP slot (free-ish)
    inv = inv * (2.0 - d * inv)                      # Newton refine -> f32 accuracy
    inv = inv * (2.0 - d * inv)

    x = x_ref[...]                                   # (row_tile, Dp)
    w = w_ref[...]                                   # (2, Dp) packed [wr; wi]
    or_ref[...] = (x * w[0:1, :]) * inv
    oi_ref[...] = (x * w[1:2, :]) * inv


# ------------------------------- wrapper ------------------------------------


def _aligned_weights(consciousness_weights, target_dim):
    """align_quantum_tensor from the PyTorch module (tiny FFT; plain JAX)."""
    dc = consciousness_weights.shape[0]
    freq = jnp.fft.fft(consciousness_weights)
    if dc > target_dim:
        freq = freq[:target_dim]
    else:
        freq = jnp.concatenate(
            [freq, jnp.zeros((target_dim - dc,), dtype=freq.dtype)], axis=-1)
    freq_norm = jnp.sqrt(jnp.sum(jnp.abs(freq) ** 2))
    return jnp.fft.ifft(freq) / (PHI * freq_norm + EPS)      # (D,) complex


def quantum_consciousness_forward(x, consciousness_weights, *,
                                  use_pallas=None, row_tile=None):
    """x: (B, D) float32.  consciousness_weights: (dc,) complex64.
    Returns complex64 array of shape (B, D)."""
    B, D = x.shape
    x = x.astype(jnp.float32)

    # ---- parameter setup (glue, plain JAX): align_quantum_tensor ----
    weights = _aligned_weights(consciousness_weights, D)
    wr = jnp.real(weights).astype(jnp.float32)
    wi = jnp.imag(weights).astype(jnp.float32)

    if use_pallas is None:
        use_pallas = (B * D) >= _MIN_ELEMS_FOR_PALLAS
    if not use_pallas:
        # Tiny-problem fast path: XLA fuses this elementwise chain for free.
        y = x.astype(jnp.complex64) * weights[None, :]
        nrm = jnp.sqrt(jnp.sum(jnp.abs(y) ** 2))
        return (y / (PHI * nrm + EPS)).astype(jnp.complex64)

    # ---- lane-dense padding: D -> multiple of 128 lanes, B -> row-tile mult ----
    Dp = max(128, _round_up(D, 128))

    # Per-generation x-tile budget: bigger tiles where VMEM is plentiful
    # (v5e/v6e: 128 MiB physical), smaller on v7x (64 MiB).  >=512-row tiles
    # reach ~85% of HBM roofline for mem-bound elementwise kernels.
    try:
        vmem_cap = pltpu.get_tpu_info().vmem_capacity_bytes
    except Exception:
        vmem_cap = 64 * 1024 * 1024
    tile_budget = (4 << 20) if vmem_cap >= (128 << 20) else (2 << 20)

    if row_tile is None:
        row_tile = tile_budget // (Dp * 4)
    row_tile = max(8, (int(row_tile) // 8) * 8)
    row_tile = min(row_tile, 1024, _round_up(B, 8))
    Bp = _round_up(B, row_tile)
    num_tiles = Bp // row_tile

    if (Bp, Dp) != (B, D):
        xp = jnp.pad(x, ((0, Bp - B), (0, Dp - D)))   # zero pad: no effect on norm
    else:
        xp = x
    wrp = jnp.pad(wr, (0, Dp - D))
    wip = jnp.pad(wi, (0, Dp - D))
    w_ri = jnp.stack([wrp, wip], axis=0)              # (2, Dp) packed weight planes
    w2 = (wrp * wrp + wip * wip).reshape(1, Dp)       # |w|^2 for the reduce pass

    tile_bytes = row_tile * Dp * 4
    # x double-buffered + two double-buffered output planes + weights + headroom;
    # capped at 32 MiB so it is safe on v7x's 64 MiB VMEM as well.
    vmem_limit = int(min(max(8 * tile_bytes + (2 << 20), 4 << 20), 32 << 20))

    # ---- pass 1: global Frobenius-norm reduction: sum(x^2 * |w|^2) ----
    norm_sq = pl.pallas_call(
        _norm_reduce_kernel,
        out_shape=jax.ShapeDtypeStruct((1, 1), jnp.float32),
        grid=(num_tiles,),
        in_specs=[
            pl.BlockSpec((row_tile, Dp), lambda i: (i, 0)),
            pl.BlockSpec((1, Dp), lambda i: (0, 0)),
        ],
        out_specs=pl.BlockSpec((1, 1), lambda i: (0, 0)),
        compiler_params=pltpu.CompilerParams(
            dimension_semantics=("arbitrary",),       # resident accumulator
            vmem_limit_bytes=vmem_limit,
        ),
    )(xp, w2)

    # ---- pass 2: y = x*w scaled by 1/(PHI*||y||_F+eps), independent tiles ----
    # TODO(synk): for v5e, deeper buffering (pipeline_mode=pl.Buffered(3)) on the
    # x spec can further hide DMA latency; left at the default double buffering.
    out_r, out_i = pl.pallas_call(
        _scale_kernel,
        out_shape=(
            jax.ShapeDtypeStruct((Bp, Dp), jnp.float32),
            jax.ShapeDtypeStruct((Bp, Dp), jnp.float32),
        ),
        grid=(num_tiles,),
        in_specs=[
            pl.BlockSpec((1, 1), lambda i: (0, 0)),           # finished norm_sq
            pl.BlockSpec((row_tile, Dp), lambda i: (i, 0)),   # x tile
            pl.BlockSpec((2, Dp), lambda i: (0, 0)),          # packed [wr; wi]
        ],
        out_specs=(
            pl.BlockSpec((row_tile, Dp), lambda i: (i, 0)),
            pl.BlockSpec((row_tile, Dp), lambda i: (i, 0)),
        ),
        compiler_params=pltpu.CompilerParams(
            dimension_semantics=("parallel",),        # megacore-splittable on v7x
            vmem_limit_bytes=vmem_limit,
        ),
    )(norm_sq, xp, w_ri)

    # Complex reassembly is one extra fused XLA pass over the result; downstream
    # planar consumers can take (out_r, out_i) directly and skip it.
    return jax.lax.complex(out_r[:B, :D], out_i[:B, :D])


def _reference(x, consciousness_weights):
    """Pure-JAX reference mirroring the PyTorch forward."""
    B, D = x.shape
    weights = _aligned_weights(consciousness_weights, D)
    y = x.astype(jnp.complex64) * weights[None, :]
    y_norm = jnp.sqrt(jnp.sum(jnp.abs(y) ** 2))
    return y / (PHI * y_norm + EPS)


if __name__ == "__main__":
    key = jax.random.PRNGKey(0)
    k_x, k_wr, k_wi, k_x2 = jax.random.split(key, 4)

    B, D = 2, 16              # batch, target_dim (= x.shape[1])
    dim_consciousness = 5     # module clamps to min(dim_consciousness, 5)

    x = jax.random.normal(k_x, (B, D), dtype=jnp.float32)
    # deterministic complex64 "randn" parameter (real/imag each ~N(0, 1/2))
    cw_r = jax.random.normal(k_wr, (dim_consciousness,)) * jnp.sqrt(0.5)
    cw_i = jax.random.normal(k_wi, (dim_consciousness,)) * jnp.sqrt(0.5)
    consciousness_weights = (cw_r + 1j * cw_i).astype(jnp.complex64)

    # 1) Pallas path (forced) at the small module shape.
    out = quantum_consciousness_forward(x, consciousness_weights, use_pallas=True)
    out = jax.block_until_ready(out)
    ref = jax.block_until_ready(_reference(x, consciousness_weights))
    np.testing.assert_allclose(np.asarray(out), np.asarray(ref),
                               rtol=1e-5, atol=1e-6)

    # 2) Multi-tile Pallas path (exercises cross-tile norm accumulation + padding).
    B2, D2 = 24, 16
    x2 = jax.random.normal(k_x2, (B2, D2), dtype=jnp.float32)
    out2 = quantum_consciousness_forward(x2, consciousness_weights,
                                         use_pallas=True, row_tile=8)
    out2 = jax.block_until_ready(out2)
    ref2 = jax.block_until_ready(_reference(x2, consciousness_weights))
    np.testing.assert_allclose(np.asarray(out2), np.asarray(ref2),
                               rtol=1e-5, atol=1e-6)

    # 3) Auto-dispatch: tiny problems take the fused plain-JAX fallback.
    out3 = jax.block_until_ready(
        quantum_consciousness_forward(x, consciousness_weights))
    np.testing.assert_allclose(np.asarray(out3), np.asarray(ref),
                               rtol=1e-5, atol=1e-6)

    print("KERNEL_OK")
</pallas_src>

<mosaic_0001>
module attributes {stable_mosaic.version = 11 : i64} {
  func.func @_norm_reduce_kernel(%arg0: i32, %arg1: memref<8x128xf32, #tpu.memory_space<vmem>>, %arg2: memref<1x128xf32, #tpu.memory_space<vmem>>, %arg3: memref<1x1xf32, #tpu.memory_space<vmem>>) attributes {dimension_semantics = [#tpu.dimension_semantics<arbitrary>], iteration_bounds = array<i64: 1>, scalar_prefetch = 0 : i64, scratch_operands = 0 : i64, tpu.core_type = #tpu.core_type<tc>, window_params = [{transform_indices = @transform_0, window_bounds = array<i64: 8, 128>}, {pipeline_mode = #tpu.pipeline_mode<synchronous>, transform_indices = @transform_1, window_bounds = array<i64: 1, 128>}, {pipeline_mode = #tpu.pipeline_mode<synchronous>, transform_indices = @transform_2, window_bounds = array<i64: 1, 1>}]} {
    %c0_i32 = arith.constant 0 : i32
    %0 = arith.cmpi eq, %arg0, %c0_i32 : i32
    %1 = arith.extui %0 : i1 to i32
    %c0_i32_0 = arith.constant 0 : i32
    %2 = arith.cmpi ne, %1, %c0_i32_0 : i32
    scf.if %2 {
      %cst_8 = arith.constant 0.000000e+00 : f32
      %16 = vector.broadcast %cst_8 : f32 to vector<1x1xf32>
      %c0_9 = arith.constant 0 : index
      %c0_10 = arith.constant 0 : index
      %17 = vector.load %arg3[%c0_9, %c0_10] : memref<1x1xf32, #tpu.memory_space<vmem>>, vector<1x1xf32>
      tpu.vector_store %arg3[%c0_9, %c0_10], %16 {strides = array<i32>} : memref<1x1xf32, #tpu.memory_space<vmem>>, vector<1x1xf32>,
    } else {
    }
    %c0 = arith.constant 0 : index
    %c0_1 = arith.constant 0 : index
    %3 = vector.load %arg1[%c0, %c0_1] : memref<8x128xf32, #tpu.memory_space<vmem>>, vector<8x128xf32>
    %c0_2 = arith.constant 0 : index
    %c0_3 = arith.constant 0 : index
    %4 = vector.load %arg3[%c0_2, %c0_3] : memref<1x1xf32, #tpu.memory_space<vmem>>, vector<1x1xf32>
    %5 = arith.mulf %3, %3 : vector<8x128xf32>
    %c0_4 = arith.constant 0 : index
    %c0_5 = arith.constant 0 : index
    %6 = vector.load %arg2[%c0_4, %c0_5] : memref<1x128xf32, #tpu.memory_space<vmem>>, vector<1x128xf32>
    %7 = vector.broadcast %6 : vector<1x128xf32> to vector<8x128xf32>
    %8 = arith.mulf %5, %7 : vector<8x128xf32>
    %9 = vector.shape_cast %8 : vector<8x128xf32> to vector<1x8x128xf32>
    %cst = arith.constant dense<0.000000e+00> : vector<1xf32>
    %10 = vector.multi_reduction <add>, %9, %cst [1, 2] : vector<1x8x128xf32> to vector<1xf32>
    %11 = vector.shape_cast %10 : vector<1xf32> to vector<1x1x1xf32>
    %12 = vector.extract %11[0, 0, 0] : f32 from vector<1x1x1xf32>
    %13 = vector.broadcast %12 : f32 to vector<1x1xf32>
    %14 = arith.addf %4, %13 : vector<1x1xf32>
    %c0_6 = arith.constant 0 : index
    %c0_7 = arith.constant 0 : index
    %15 = vector.load %arg3[%c0_6, %c0_7] : memref<1x1xf32, #tpu.memory_space<vmem>>, vector<1x1xf32>
    tpu.vector_store %arg3[%c0_6, %c0_7], %14 {strides = array<i32>} : memref<1x1xf32, #tpu.memory_space<vmem>>, vector<1x1xf32>,
    return
  }
  func.func @transform_0(%arg0: i32) -> (i32, i32) {
    %c0_i32 = arith.constant 0 : i32
    %c0_i32_0 = arith.constant 0 : i32
    return %arg0, %c0_i32 : i32, i32
  }
  func.func @transform_1(%arg0: i32) -> (i32, i32) {
    %c0_i32 = arith.constant 0 : i32
    %c0_i32_0 = arith.constant 0 : i32
    %c0_i32_1 = arith.constant 0 : i32
    return %c0_i32, %c0_i32_0 : i32, i32
  }
  func.func @transform_2(%arg0: i32) -> (i32, i32) {
    %c0_i32 = arith.constant 0 : i32
    %c0_i32_0 = arith.constant 0 : i32
    %c0_i32_1 = arith.constant 0 : i32
    return %c0_i32, %c0_i32_0 : i32, i32
  }
}

</mosaic_0001>

<llo_original>
// kernel: tpu_custom_call.1
$region0: #{tpu_custom_call.1}
  #allocation0 [shape = 'u32[]', space=smem, size = 0x4, offset = 0x4, fixed_abs, tag = 'smem constant byte address 0x4 - core index']
  #allocation1 [shape = 'u32[144,128]{1,0:T(1,128)}', space=vmem, size = 0x12000, scoped, tag = 'internal scratch']
  %s0 = inlined_call_operand.hbm [shape: f32[8,128], index: 0, kind: input, shape index: {}]
  %s1 = inlined_call_operand.vmem [shape: f32[1,128], index: 1, kind: input, shape index: {}]
  %s2 = inlined_call_operand.hbm [shape: f32[1,1], index: 2, kind: output, shape index: {}]
  %s3 = sld [smem:[#allocation0]]
  $region26: #{tpu_custom_call.1} parent=0
    _
  %s5 = ssub.s32 1, %s3
  %s6 = scalar_select 0, %s5, %s3
  $region1: #{tpu_custom_call.1} parent=0
    #allocation2 [shape = 'u8[4096]{0}', space=vmem, size = 0x1000, scoped, tag = 'input window, operand 0, single buffered']
    #allocation3 [shape = 's32[1]{0}', space=sflag, size = 0x4, scoped, tag = 'scoped memory for tpu_custom_call.1']
    #allocation4 [shape = 's32[1]{0}', space=sflag, size = 0x4, scoped, tag = 'scoped memory for tpu_custom_call.1']
    #allocation5 [shape = 'u8[512]{0}', space=vmem, size = 0x400, scoped, tag = 'output window, operand 0, single buffered']
    %7 = vsyncpa [#allocation3], 0
    %8 = vsyncpa [#allocation4], 0
    // Predicated region
    $region2: #{tpu_custom_call.1} parent=1 // pred_check
      _
    $region3: #{tpu_custom_call.1} parent=1 // pred_check_branch
      %10 = sbr.rel (0) target = $region5
    $region4: #{tpu_custom_call.1} parent=1 // pred_region
      %s12 = ssub.s32 128, 128
      %13 = vsyncadd [#allocation3], %s12
      %s15 = sshll.u32 [#allocation2], 4
      %s16 = int_to_ptr.vmem [resolvable:$true] %s15
      %18 = dma.hbm_to_vmem [thread:$0]  %s0, 128, %s16, [#allocation3]
    $region5: #{tpu_custom_call.1} parent=1 // pred_fallthru
      _
    // Predicated region
    $region6: #{tpu_custom_call.1} parent=1 // pred_check
      _
    $region7: #{tpu_custom_call.1} parent=1 // pred_check_branch
      %20 = sbr.rel (0) target = $region9
    $region8: #{tpu_custom_call.1} parent=1 // pred_region
      _
    $region9: #{tpu_custom_call.1} parent=1 // pred_fallthru
      _
    // Predicated region
    $region10: #{tpu_custom_call.1} parent=1 // pred_check
      _
    $region11: #{tpu_custom_call.1} parent=1 // pred_check_branch
      %22 = sbr.rel (0) target = $region13
    $region12: #{tpu_custom_call.1} parent=1 // pred_region
      %23 = dma.done [#allocation3], 128
    $region13: #{tpu_custom_call.1} parent=1 // pred_fallthru
      _
    %p24 = scmp.eq.s32.totalorder 0, 0
    // Predicated region
    $region14: #{tpu_custom_call.1} parent=1 // pred_check
      %p25 = pneg %p24
    $region15: #{tpu_custom_call.1} parent=1 // pred_check_branch
      %27 = sbr.rel (%p25) target = $region17
    $region16: #{tpu_custom_call.1} parent=1 // pred_region
      %vm28 = vcmask 0
      %29 = vst.msk [vmem:[#allocation5] sm:$0x1] %vm28, 0.0
    $region17: #{tpu_custom_call.1} parent=1 // pred_fallthru
      _
    %v30 = vld [vmem:[#allocation2] sm:$0xff]
    %v31 = vld [vmem:[#allocation5] sm:$0x1]
    %v32 = vmul.f32 %v30, %v30
    %v33 = vld [vmem:[%s1] sm:$0x1]
    %v35 = vlaneseq
    %v36 = vshrl.u32 %v35, 7
    %v37 = vsub.s32 0, %v36
    %v38 = vrot.slane %v33, %v37
    %v40 = vmul.f32 %v32, %v38
    %41 = vadd.xlane.f32.xlu0 %v40
    %v42 = vpop.xlane.xlu0 %41
    %v43 = vrot.slane %v42, 4
    %v44 = vadd.f32 %v42, %v43
    %v45 = vrot.slane %v44, 2
    %v46 = vadd.f32 %v44, %v45
    %v47 = vrot.slane %v46, 1
    %v48 = vadd.f32 %v46, %v47
    %s49 = vtos %v48
    %v50 = vstv %s49
    %v51 = vadd.f32 %v31, %v50
    %vm52 = vcmask 0
    %53 = vst.msk [vmem:[#allocation5] sm:$0x1] %vm52, %v51
    // Predicated region
    $region18: #{tpu_custom_call.1} parent=1 // pred_check
      _
    $region19: #{tpu_custom_call.1} parent=1 // pred_check_branch
      %55 = sbr.rel (0) target = $region21
    $region20: #{tpu_custom_call.1} parent=1 // pred_region
      %s57 = ssub.s32 16, 16
      %58 = vsyncadd [#allocation4], %s57
      %s60 = sshll.u32 [#allocation5], 4
      %s61 = int_to_ptr.vmem [resolvable:$true] %s60
      %63 = dma.vmem_to_hbm [thread:$0]  %s61, 16, %s2, [#allocation4]
    $region21: #{tpu_custom_call.1} parent=1 // pred_fallthru
      _
    // Predicated region
    $region22: #{tpu_custom_call.1} parent=1 // pred_check
      _
    $region23: #{tpu_custom_call.1} parent=1 // pred_check_branch
      %65 = sbr.rel (0) target = $region25
    $region24: #{tpu_custom_call.1} parent=1 // pred_region
      %66 = dma.done [#allocation4], 16
    $region25: #{tpu_custom_call.1} parent=1 // pred_fallthru
      _
    %67 = vsyncpa [#allocation3], 1
    %68 = vsyncpa [#allocation4], 1

</llo_original>
